<compile_context>
chip_gen: v6e
topology: v6e:2x2x1
jax: 0.10.0
libtpu: 0.0.40
codegen_flags: <defaults>
</compile_context>

<pallas_src>
import functools

import jax
import jax.numpy as jnp
from jax.experimental import pallas as pl
from jax.experimental.pallas import tpu as pltpu

_HP = jax.lax.Precision.HIGHEST


# ------------------------------ fused kernel ---------------------------------
def _fused_forward_kernel(idx_ref, aconv_ref, ep_ref, wfold_ref, bfold_ref,
                          out_ref, *, vpad, conv_w, k_max, bt, neg_slope):
    """One grid step = `bt` batch rows: whole network, one MXU conv matmul."""
    w = conv_w
    idxs = idx_ref[0]                                           # (bt, l_pad) i32
    iota_v = jax.lax.broadcasted_iota(jnp.int32, (vpad, w), 0)  # vocab-id rows

    # Stacked shifted one-hot: row d*Vpad+v, column b*W+t.  This is the exact
    # embedding lookup + im2col in a single 0/1 matrix (the embedding is already
    # folded into aconv), built from cheap int32 compares.
    blocks = []
    for b in range(bt):
        idx_b = idxs if bt == 1 else idxs[b:b + 1, :]           # (1, l_pad)
        parts = [(iota_v == idx_b[:, d:d + w]).astype(jnp.float32)
                 for d in range(k_max)]                         # k_max x (Vpad, W)
        blocks.append(jnp.concatenate(parts, axis=0))           # (k_max*Vpad, W)
    onehot = blocks[0] if bt == 1 else jnp.concatenate(blocks, axis=1)

    # ALL conv blocks at once: (R, k_max*Vpad) @ (k_max*Vpad, bt*W) on the MXU.
    conv = jnp.dot(aconv_ref[...], onehot,
                   preferred_element_type=jnp.float32)          # (R, bt*W)

    # conv bias -> LeakyReLU(0.2) -> folded inference BatchNorm (per channel).
    conv = conv + ep_ref[:, 0:1]
    conv = jnp.where(conv >= 0, conv, neg_slope * conv)
    conv = conv * ep_ref[:, 1:2] + ep_ref[:, 2:3]

    # MaxPool1d(2): adjacent-column max.  Odd / out-of-range / cross-row columns
    # are masked by zero columns in the folded fc weights, so no compaction here.
    tot = bt * w
    m = jnp.maximum(conv[:, 0:tot - 1], conv[:, 1:tot])         # (R, bt*W - 1)

    # fc2(fc1(flatten+cat(.)))  folded on the host into wfold (C, R, W-1):
    # per class one broadcast multiply + lane reduce + sublane reduce — no more
    # 24 serial cross-lane reductions chained through an accumulator.
    wfold = wfold_ref[...]                                      # (C, R, W-1)
    cols = []
    for b in range(bt):
        m_b = m if bt == 1 else m[:, b * w:b * w + (w - 1)]     # (R, W-1)
        prod = wfold * m_b[jnp.newaxis, :, :]                   # (C, R, W-1)
        cols.append(jnp.sum(jnp.sum(prod, axis=2), axis=1, keepdims=True))
    logits = cols[0] if bt == 1 else jnp.concatenate(cols, axis=1)
    out_ref[0] = logits + bfold_ref[...]                        # (C, bt)


def discriminator_forward(verbatim_indices, kp, *, batch_tile=None):
    """verbatim_indices: (B, L) int; kp: folded params.  Returns (B, C) logits."""
    batch, seq_len = verbatim_indices.shape
    filter_sizes = kp["filter_sizes"]
    k_min, k_max = min(filter_sizes), max(filter_sizes)
    conv_w = seq_len - k_min + 1                  # widest conv output (148)
    l_pad = conv_w + k_max - 1                    # padded sequence width (152)
    num_classes, n_rows, w_m = kp["wfold"].shape
    vpad = kp["aconv"].shape[1] // k_max

    if batch_tile is None:
        # Small batch: one row per step so v7x's 2 TensorCores both get work.
        # Larger batch: fold rows into the matmul N dimension per step.
        batch_tile = 1 if batch <= 8 else 8
    bt = max(1, min(batch_tile, batch))
    nsteps = pl.cdiv(batch, bt)
    b_pad = nsteps * bt

    idx = jnp.pad(verbatim_indices.astype(jnp.int32),
                  ((0, b_pad - batch), (0, l_pad - seq_len)),
                  constant_values=-1)             # -1 never matches the one-hot
    idx = idx.reshape(nsteps, bt, l_pad)

    kern = functools.partial(_fused_forward_kernel, vpad=vpad, conv_w=conv_w,
                             k_max=k_max, bt=bt, neg_slope=0.2)

    flops = 2 * b_pad * (n_rows * k_max * vpad * conv_w
                         + num_classes * n_rows * w_m)
    bytes_accessed = 4 * (idx.size + kp["aconv"].size + kp["ep"].size
                          + kp["wfold"].size + kp["bfold"].size
                          + b_pad * num_classes)

    out = pl.pallas_call(
        kern,
        grid=(nsteps,),
        in_specs=[
            pl.BlockSpec((1, bt, l_pad), lambda i: (i, 0, 0)),
            pl.BlockSpec(kp["aconv"].shape, lambda i: (0, 0)),
            pl.BlockSpec(kp["ep"].shape, lambda i: (0, 0)),
            pl.BlockSpec(kp["wfold"].shape, lambda i: (0, 0, 0)),
            pl.BlockSpec(kp["bfold"].shape, lambda i: (0, 0)),
        ],
        out_specs=pl.BlockSpec((1, num_classes, bt), lambda i: (i, 0, 0)),
        out_shape=jax.ShapeDtypeStruct((nsteps, num_classes, bt), jnp.float32),
        compiler_params=pltpu.CompilerParams(
            dimension_semantics=("parallel",)),
        cost_estimate=pl.CostEstimate(flops=flops, transcendentals=0,
                                      bytes_accessed=bytes_accessed),
    )(idx, kp["aconv"], kp["ep"], kp["wfold"], kp["bfold"])

    return jnp.transpose(out, (0, 2, 1)).reshape(b_pad, num_classes)[:batch]


# ------------------------- host-side parameter folding ------------------------
def fold_params(p, *, seq_len, eps=1e-5):
    """Fold PyTorch-layout parameters into the fused-kernel layout (inference)."""
    filter_sizes = p["filter_sizes"]
    num_filters = p["conv_blocks"][0]["w"].shape[0]
    vocab, _ = p["emb"].shape
    num_classes = p["w2"].shape[0]
    k_min, k_max = min(filter_sizes), max(filter_sizes)
    conv_w = seq_len - k_min + 1
    w_m = conv_w - 1
    n_rows = len(filter_sizes) * num_filters
    vpad = -(-vocab // 8) * 8            # sublane-aligned one-hot vocab groups

    # fc2 o fc1 fold (Dropout identity at inference; no activation in between).
    wfc = jnp.dot(p["w2"], p["w1"], precision=_HP)          # (C, channels_out)
    bfold = (jnp.dot(p["w2"], p["b1"], precision=_HP)
             + p["b2"]).reshape(num_classes, 1)

    aconv = jnp.zeros((n_rows, k_max * vpad), jnp.float32)
    ep = jnp.zeros((n_rows, 3), jnp.float32)
    wfold = jnp.zeros((num_classes, n_rows, w_m), jnp.float32)

    col_off = 0
    for j, (k, blk) in enumerate(zip(filter_sizes, p["conv_blocks"])):
        rows = slice(j * num_filters, (j + 1) * num_filters)
        # Embedding folded into the conv weights:
        #   aconv[r, d*Vpad + v] = sum_e conv_weight[r, e, d] * emb[v, e]
        for d in range(k):
            aconv = aconv.at[rows, d * vpad:d * vpad + vocab].set(
                jnp.dot(blk["w"][:, :, d], p["emb"].T, precision=_HP))
        # Inference BatchNorm (running stats) -> per-channel scale/shift.
        scale = blk["gamma"] * jax.lax.rsqrt(blk["var"] + eps)
        shift = blk["beta"] - blk["mean"] * scale
        ep = ep.at[rows, 0].set(blk["b"])
        ep = ep.at[rows, 1].set(scale)
        ep = ep.at[rows, 2].set(shift)
        # Folded fc weights expanded to the un-compacted layout used in-kernel:
        # pooled position p of channel f lives at even column 2p of row j*F+f.
        n_pool = (seq_len - k + 1) // 2
        wfc_blk = wfc[:, col_off:col_off + num_filters * n_pool]
        wfc_blk = wfc_blk.reshape(num_classes, num_filters, n_pool)
        wfold = wfold.at[:, rows, 0:2 * n_pool:2].set(wfc_blk)
        col_off += num_filters * n_pool

    return {"filter_sizes": tuple(filter_sizes), "aconv": aconv, "ep": ep,
            "wfold": wfold, "bfold": bfold}


# ------------------------------ param builders --------------------------------
def build_params(key, *, vocab_size, emb_dim, num_filters, filter_sizes,
                 seq_len, hidden_dims, num_classes):
    assert seq_len == 150, "module's channels_out formula hard-codes seq len 150"
    keys = jax.random.split(key, 3 + len(filter_sizes))
    emb = 0.05 * jax.random.normal(keys[0], (vocab_size, emb_dim), jnp.float32)

    conv_blocks = []
    for i, k in enumerate(filter_sizes):
        bound = (6.0 / (emb_dim * k)) ** 0.5        # kaiming_uniform-style
        w = jax.random.uniform(keys[3 + i], (num_filters, emb_dim, k),
                               jnp.float32, -bound, bound)
        conv_blocks.append({
            "w": w,
            "b": jnp.zeros((num_filters,), jnp.float32),
            "gamma": jnp.ones((num_filters,), jnp.float32),
            "beta": jnp.zeros((num_filters,), jnp.float32),
            "mean": jnp.zeros((num_filters,), jnp.float32),
            "var": jnp.ones((num_filters,), jnp.float32),
        })

    channels_out = sum((150 - (k - 1)) // 2 * num_filters for k in filter_sizes)
    b1w = (6.0 / channels_out) ** 0.5
    w1 = jax.random.uniform(keys[1], (hidden_dims, channels_out), jnp.float32,
                            -b1w, b1w)
    b2w = (6.0 / hidden_dims) ** 0.5
    w2 = jax.random.uniform(keys[2], (num_classes, hidden_dims), jnp.float32,
                            -b2w, b2w)

    return {
        "emb": emb,
        "filter_sizes": tuple(filter_sizes),
        "conv_blocks": conv_blocks,
        "w1": w1, "b1": jnp.zeros((hidden_dims,), jnp.float32),
        "w2": w2, "b2": jnp.zeros((num_classes,), jnp.float32),
    }


# --------------------------- pure-JAX reference -------------------------------
def reference_forward(indices, p, *, eps=1e-5, neg_slope=0.2):
    """Pure-JAX replica of the PyTorch module's forward (inference mode)."""
    x = p["emb"][indices]                                   # (B, L, E)
    batch, seq_len, _ = x.shape
    feats = []
    for blk in p["conv_blocks"]:
        w = blk["w"]                                        # (F, E, k)
        k = w.shape[2]
        l_out = seq_len - k + 1
        conv = sum(jnp.einsum("ble,fe->blf", x[:, d:d + l_out, :], w[:, :, d],
                              precision=_HP) for d in range(k))
        conv = conv + blk["b"][None, None, :]
        conv = jnp.where(conv >= 0, conv, neg_slope * conv)
        scale = blk["gamma"] * jax.lax.rsqrt(blk["var"] + eps)
        shift = blk["beta"] - blk["mean"] * scale
        conv = conv * scale[None, None, :] + shift[None, None, :]
        n_pool = l_out // 2
        pooled = jnp.maximum(conv[:, 0:2 * n_pool:2, :],
                             conv[:, 1:2 * n_pool:2, :])    # (B, n_pool, F)
        # nn.Flatten of the (B, F, n_pool) conv-block output: channel-major.
        feats.append(jnp.transpose(pooled, (0, 2, 1)).reshape(batch, -1))
    x_cat = jnp.concatenate(feats, axis=1)
    h = jnp.dot(x_cat, p["w1"].T, precision=_HP) + p["b1"]
    return jnp.dot(h, p["w2"].T, precision=_HP) + p["b2"]


# ---------------------------------- main --------------------------------------
if __name__ == "__main__":
    VOCAB, EMB, NUM_FILTERS = 50, 16, 8
    FILTER_SIZES = (3, 4, 5)
    SEQ_LEN, HIDDEN, NUM_CLASSES, BATCH = 150, 32, 2, 2

    key = jax.random.PRNGKey(0)
    pkey, ikey = jax.random.split(key)
    params = build_params(pkey, vocab_size=VOCAB, emb_dim=EMB,
                          num_filters=NUM_FILTERS, filter_sizes=FILTER_SIZES,
                          seq_len=SEQ_LEN, hidden_dims=HIDDEN,
                          num_classes=NUM_CLASSES)
    kparams = fold_params(params, seq_len=SEQ_LEN)

    verbatim_indices = jax.random.randint(ikey, (BATCH, SEQ_LEN), 0, VOCAB,
                                          dtype=jnp.int32)

    logits = jax.block_until_ready(discriminator_forward(verbatim_indices,
                                                         kparams))

    assert logits.shape == (BATCH, NUM_CLASSES), logits.shape
    assert bool(jnp.all(jnp.isfinite(logits)))

    ref = jax.block_until_ready(reference_forward(verbatim_indices, params))
    assert jnp.allclose(logits, ref, rtol=2e-3, atol=2e-3), (logits, ref)
    print("KERNEL_OK")
</pallas_src>

<mosaic_0001>
module attributes {stable_mosaic.version = 11 : i64} {
  func.func @_fused_forward_kernel(%arg0: i32, %arg1: memref<1x1x152xi32, #tpu.memory_space<vmem>>, %arg2: memref<24x280xf32, #tpu.memory_space<vmem>>, %arg3: memref<24x3xf32, #tpu.memory_space<vmem>>, %arg4: memref<2x24x147xf32, #tpu.memory_space<vmem>>, %arg5: memref<2x1xf32, #tpu.memory_space<vmem>>, %arg6: memref<1x2x1xf32, #tpu.memory_space<vmem>>) attributes {dimension_semantics = [#tpu.dimension_semantics<parallel>], iteration_bounds = array<i64: 2>, scalar_prefetch = 0 : i64, scratch_operands = 0 : i64, tpu.core_type = #tpu.core_type<tc>, window_params = [{transform_indices = @transform_0, window_bounds = array<i64: 1, 1, 152>}, {pipeline_mode = #tpu.pipeline_mode<synchronous>, transform_indices = @transform_1, window_bounds = array<i64: 24, 280>}, {pipeline_mode = #tpu.pipeline_mode<synchronous>, transform_indices = @transform_2, window_bounds = array<i64: 24, 3>}, {pipeline_mode = #tpu.pipeline_mode<synchronous>, transform_indices = @transform_3, window_bounds = array<i64: 2, 24, 147>}, {pipeline_mode = #tpu.pipeline_mode<synchronous>, transform_indices = @transform_4, window_bounds = array<i64: 2, 1>}, {transform_indices = @transform_5, window_bounds = array<i64: 1, 2, 1>}]} {
    %c0 = arith.constant 0 : index
    %c0_0 = arith.constant 0 : index
    %c0_1 = arith.constant 0 : index
    %0 = vector.load %arg1[%c0, %c0_0, %c0_1] : memref<1x1x152xi32, #tpu.memory_space<vmem>>, vector<1x1x152xi32>
    %1 = vector.shape_cast %0 : vector<1x1x152xi32> to vector<1x152xi32>
    %2 = tpu.iota {dimensions = array<i32: 0>} : vector<56x148xi32>
    %3 = vector.extract_strided_slice %1 {offsets = [0, 0], sizes = [1, 148], strides = [1, 1]} : vector<1x152xi32> to vector<1x148xi32>
    %4 = vector.broadcast %3 : vector<1x148xi32> to vector<56x148xi32>
    %5 = arith.cmpi eq, %2, %4 : vector<56x148xi32>
    %6 = arith.extui %5 : vector<56x148xi1> to vector<56x148xi32>
    %7 = arith.sitofp %6 : vector<56x148xi32> to vector<56x148xf32>
    %8 = vector.extract_strided_slice %1 {offsets = [0, 1], sizes = [1, 148], strides = [1, 1]} : vector<1x152xi32> to vector<1x148xi32>
    %9 = vector.broadcast %8 : vector<1x148xi32> to vector<56x148xi32>
    %10 = arith.cmpi eq, %2, %9 : vector<56x148xi32>
    %11 = arith.extui %10 : vector<56x148xi1> to vector<56x148xi32>
    %12 = arith.sitofp %11 : vector<56x148xi32> to vector<56x148xf32>
    %13 = vector.extract_strided_slice %1 {offsets = [0, 2], sizes = [1, 148], strides = [1, 1]} : vector<1x152xi32> to vector<1x148xi32>
    %14 = vector.broadcast %13 : vector<1x148xi32> to vector<56x148xi32>
    %15 = arith.cmpi eq, %2, %14 : vector<56x148xi32>
    %16 = arith.extui %15 : vector<56x148xi1> to vector<56x148xi32>
    %17 = arith.sitofp %16 : vector<56x148xi32> to vector<56x148xf32>
    %18 = vector.extract_strided_slice %1 {offsets = [0, 3], sizes = [1, 148], strides = [1, 1]} : vector<1x152xi32> to vector<1x148xi32>
    %19 = vector.broadcast %18 : vector<1x148xi32> to vector<56x148xi32>
    %20 = arith.cmpi eq, %2, %19 : vector<56x148xi32>
    %21 = arith.extui %20 : vector<56x148xi1> to vector<56x148xi32>
    %22 = arith.sitofp %21 : vector<56x148xi32> to vector<56x148xf32>
    %23 = vector.extract_strided_slice %1 {offsets = [0, 4], sizes = [1, 148], strides = [1, 1]} : vector<1x152xi32> to vector<1x148xi32>
    %24 = vector.broadcast %23 : vector<1x148xi32> to vector<56x148xi32>
    %25 = arith.cmpi eq, %2, %24 : vector<56x148xi32>
    %26 = arith.extui %25 : vector<56x148xi1> to vector<56x148xi32>
    %27 = arith.sitofp %26 : vector<56x148xi32> to vector<56x148xf32>
    %28 = tpu.concatenate %7, %12, %17, %22, %27 in 0 : vector<56x148xf32>, vector<56x148xf32>, vector<56x148xf32>, vector<56x148xf32>, vector<56x148xf32> -> vector<280x148xf32>
    %c0_2 = arith.constant 0 : index
    %c0_3 = arith.constant 0 : index
    %29 = vector.load %arg2[%c0_2, %c0_3] : memref<24x280xf32, #tpu.memory_space<vmem>>, vector<24x280xf32>
    %cst = arith.constant dense<0.000000e+00> : vector<24x148xf32>
    %30 = tpu.matmul %29, %28, %cst {dimension_numbers = #tpu.dot_dimension_numbers<[1], [0], [0], [1], [0, 0, 1, 1], [], []>} : vector<24x280xf32>, vector<280x148xf32>, vector<24x148xf32> -> vector<24x148xf32>
    %c0_4 = arith.constant 0 : index
    %c0_5 = arith.constant 0 : index
    %31 = vector.load %arg3[%c0_4, %c0_5] : memref<24x3xf32, #tpu.memory_space<vmem>>, vector<24x1xf32>
    %32 = vector.broadcast %31 : vector<24x1xf32> to vector<24x148xf32>
    %33 = arith.addf %30, %32 : vector<24x148xf32>
    %cst_6 = arith.constant 0.000000e+00 : f32
    %34 = vector.broadcast %cst_6 : f32 to vector<24x148xf32>
    %35 = arith.cmpf oge, %33, %34 : vector<24x148xf32>
    %cst_7 = arith.constant 2.000000e-01 : f32
    %36 = vector.broadcast %cst_7 : f32 to vector<24x148xf32>
    %37 = arith.mulf %36, %33 : vector<24x148xf32>
    %38 = arith.select %35, %33, %37 : vector<24x148xi1>, vector<24x148xf32>
    %c0_8 = arith.constant 0 : index
    %c1 = arith.constant 1 : index
    %39 = vector.load %arg3[%c0_8, %c1] : memref<24x3xf32, #tpu.memory_space<vmem>>, vector<24x1xf32>
    %40 = vector.broadcast %39 : vector<24x1xf32> to vector<24x148xf32>
    %41 = arith.mulf %38, %40 : vector<24x148xf32>
    %c0_9 = arith.constant 0 : index
    %c2 = arith.constant 2 : index
    %42 = vector.load %arg3[%c0_9, %c2] : memref<24x3xf32, #tpu.memory_space<vmem>>, vector<24x1xf32>
    %43 = vector.broadcast %42 : vector<24x1xf32> to vector<24x148xf32>
    %44 = arith.addf %41, %43 : vector<24x148xf32>
    %45 = vector.extract_strided_slice %44 {offsets = [0, 0], sizes = [24, 147], strides = [1, 1]} : vector<24x148xf32> to vector<24x147xf32>
    %46 = vector.extract_strided_slice %44 {offsets = [0, 1], sizes = [24, 147], strides = [1, 1]} : vector<24x148xf32> to vector<24x147xf32>
    %47 = arith.maximumf %45, %46 : vector<24x147xf32>
    %c0_10 = arith.constant 0 : index
    %c0_11 = arith.constant 0 : index
    %c0_12 = arith.constant 0 : index
    %48 = vector.load %arg4[%c0_10, %c0_11, %c0_12] : memref<2x24x147xf32, #tpu.memory_space<vmem>>, vector<2x24x147xf32>
    %49 = vector.shape_cast %47 : vector<24x147xf32> to vector<1x24x147xf32>
    %50 = vector.broadcast %49 : vector<1x24x147xf32> to vector<2x24x147xf32>
    %51 = arith.mulf %48, %50 : vector<2x24x147xf32>
    %cst_13 = arith.constant dense<0.000000e+00> : vector<2x24xf32>
    %52 = vector.multi_reduction <add>, %51, %cst_13 [2] : vector<2x24x147xf32> to vector<2x24xf32>
    %cst_14 = arith.constant dense<0.000000e+00> : vector<2xf32>
    %53 = vector.multi_reduction <add>, %52, %cst_14 [1] : vector<2x24xf32> to vector<2xf32>
    %54 = vector.shape_cast %53 : vector<2xf32> to vector<2x1xf32>
    %c0_15 = arith.constant 0 : index
    %c0_16 = arith.constant 0 : index
    %55 = vector.load %arg5[%c0_15, %c0_16] : memref<2x1xf32, #tpu.memory_space<vmem>>, vector<2x1xf32>
    %56 = arith.addf %54, %55 : vector<2x1xf32>
    %c0_17 = arith.constant 0 : index
    %c0_18 = arith.constant 0 : index
    %c0_19 = arith.constant 0 : index
    %57 = vector.load %arg6[%c0_17, %c0_18, %c0_19] : memref<1x2x1xf32, #tpu.memory_space<vmem>>, vector<1x2x1xf32>
    %58 = vector.shape_cast %57 : vector<1x2x1xf32> to vector<2x1xf32>
    %59 = vector.shape_cast %56 : vector<2x1xf32> to vector<1x2x1xf32>
    tpu.vector_store %arg6[%c0_17, %c0_18, %c0_19], %59 {strides = array<i32>} : memref<1x2x1xf32, #tpu.memory_space<vmem>>, vector<1x2x1xf32>,
    return
  }
  func.func @transform_0(%arg0: i32) -> (i32, i32, i32) {
    %c0_i32 = arith.constant 0 : i32
    %c0_i32_0 = arith.constant 0 : i32
    %c0_i32_1 = arith.constant 0 : i32
    return %arg0, %c0_i32, %c0_i32_0 : i32, i32, i32
  }
  func.func @transform_1(%arg0: i32) -> (i32, i32) {
    %c0_i32 = arith.constant 0 : i32
    %c0_i32_0 = arith.constant 0 : i32
    %c0_i32_1 = arith.constant 0 : i32
    return %c0_i32, %c0_i32_0 : i32, i32
  }
  func.func @transform_2(%arg0: i32) -> (i32, i32) {
    %c0_i32 = arith.constant 0 : i32
    %c0_i32_0 = arith.constant 0 : i32
    %c0_i32_1 = arith.constant 0 : i32
    return %c0_i32, %c0_i32_0 : i32, i32
  }
  func.func @transform_3(%arg0: i32) -> (i32, i32, i32) {
    %c0_i32 = arith.constant 0 : i32
    %c0_i32_0 = arith.constant 0 : i32
    %c0_i32_1 = arith.constant 0 : i32
    %c0_i32_2 = arith.constant 0 : i32
    return %c0_i32, %c0_i32_0, %c0_i32_1 : i32, i32, i32
  }
  func.func @transform_4(%arg0: i32) -> (i32, i32) {
    %c0_i32 = arith.constant 0 : i32
    %c0_i32_0 = arith.constant 0 : i32
    %c0_i32_1 = arith.constant 0 : i32
    return %c0_i32, %c0_i32_0 : i32, i32
  }
  func.func @transform_5(%arg0: i32) -> (i32, i32, i32) {
    %c0_i32 = arith.constant 0 : i32
    %c0_i32_0 = arith.constant 0 : i32
    %c0_i32_1 = arith.constant 0 : i32
    return %arg0, %c0_i32, %c0_i32_0 : i32, i32, i32
  }
}

</mosaic_0001>

<llo_original>
// kernel: tpu_custom_call.1
$region0: #{tpu_custom_call.1}
  #allocation0 [shape = 'u32[]', space=smem, size = 0x4, offset = 0x4, fixed_abs, tag = 'smem constant byte address 0x4 - core index']
  #allocation1 [shape = 'u32[144,128]{1,0:T(1,128)}', space=vmem, size = 0x12000, scoped, tag = 'internal scratch']
  %s0 = inlined_call_operand.vmem [shape: s32[2,1,152], index: 0, kind: input, shape index: {}]
  %s1 = inlined_call_operand.hbm [shape: f32[24,280], index: 1, kind: input, shape index: {}]
  %s2 = inlined_call_operand.vmem [shape: f32[24,3], index: 2, kind: input, shape index: {}]
  %s3 = inlined_call_operand.hbm [shape: f32[2,24,147], index: 3, kind: input, shape index: {}]
  %s4 = inlined_call_operand.vmem [shape: f32[2,1], index: 4, kind: input, shape index: {}]
  %s5 = inlined_call_operand.vmem [shape: f32[2,2,1], index: 5, kind: output, shape index: {}]
  %s6 = sld [smem:[#allocation0]]
  $region61: #{tpu_custom_call.1} parent=0
    _
  %s8 = ssub.s32 1, %s6
  %s9 = scalar_select 0, %s8, %s6
  $region1: #{tpu_custom_call.1} parent=0
    #allocation2 [shape = 'u8[36864]{0}', space=vmem, size = 0x9000, scoped, tag = 'input window, operand 1, single buffered']
    #allocation3 [shape = 's32[2]{0}', space=sflag, size = 0x8, scoped, tag = 'scoped memory for tpu_custom_call.1']
    #allocation4 [shape = 'u8[49152]{0}', space=vmem, size = 0xc000, scoped, tag = 'input window, operand 3, single buffered']
    #allocation5 [shape = 's32[1]{0}', space=sflag, size = 0x4, scoped, tag = 'scoped memory for tpu_custom_call.1']
    %10 = vsyncpa [#allocation3], 0
    %11 = vsyncpa [#allocation5], 0
    loop: start=0, step=1, limit=4
    $region2: #{tpu_custom_call.1} parent=1 // loop_pre_header
      _
    $region3: #{tpu_custom_call.1} parent=1 // loop_header
      %s13 = sphi 0, %s17
      %p14 = scmp.ge.s32.totalorder %s13, 4
      %s23 = sphi 0, %s25
      %s26 = sphi 0, %s23
      %s27 = sphi 0, %s26
      %s43 = sphi 0, %s27
      %s47 = sphi 0, %s47
      %s49 = sphi 0, %s47
      %s50 = sphi 0, %s49
      %s64 = sphi 0, %s50
      %s68 = sphi 0, %s68
      %s70 = sphi 0, %s68
      %s71 = sphi 0, %s70
      %s85 = sphi 0, %s71
      %s89 = sphi 0, %s89
      %s91 = sphi 0, %s89
      %s92 = sphi 0, %s91
      %s106 = sphi 0, %s92
      %s110 = sphi 0, %s110
      %s112 = sphi 0, %s110
      %s113 = sphi 0, %s112
      %s127 = sphi 0, %s113
      %s133 = sphi 0, %s135
      %s136 = sphi 0, %s133
      %s137 = sphi 0, %s136
      %s153 = sphi 0, %s137
    $region4: #{tpu_custom_call.1} parent=1 // loop_header_branch
      %16 = sbr.rel (%p14) target = $region8
    $region5: #{tpu_custom_call.1} parent=1 // loop_body
      %s18 = ssub.s32 %s13, 1
      %s19 = ssub.s32 %s13, 2
      %s20 = sadd.s32 %s13, 1
      %s21 = ssub.s32 %s13, %s20
      %p22 = scmp.eq.s32.totalorder %s21, 0
      %s24 = sadd.s32 %s23, 1
      %s25 = scalar_select %p22, %s23, %s24
      %p28 = pneg %p22
      %p29 = scmp.eq.s32.totalorder %s13, 1
      %p30 = por %p28, %p29
      %p31 = scmp.ne.s32.totalorder %s23, %s26
      %p32 = scmp.eq.s32.totalorder %s13, 0
      %p33 = por %p31, %p32
      %p34 = scmp.ne.s32.totalorder %s23, %s26
      %p35 = scmp.eq.s32.totalorder %s18, 1
      %p36 = por %p34, %p35
      %p37 = scmp.ne.s32.totalorder %s26, %s27
      %p38 = scmp.eq.s32.totalorder %s18, 0
      %p39 = por %p37, %p38
      %p40 = scmp.ne.s32.totalorder %s26, %s27
      %p41 = scmp.eq.s32.totalorder %s19, 1
      %p42 = por %p40, %p41
      %p44 = scmp.ne.s32.totalorder %s27, %s43
      %p45 = scmp.eq.s32.totalorder %s19, 0
      %p46 = por %p44, %p45
      %s48 = sadd.s32 %s47, 1
      %p51 = scmp.eq.s32.totalorder %s13, 1
      %p52 = scmp.ne.s32.totalorder %s47, %s49
      %p53 = scmp.eq.s32.totalorder %s13, 0
      %p54 = por %p52, %p53
      %p55 = scmp.ne.s32.totalorder %s47, %s49
      %p56 = scmp.eq.s32.totalorder %s18, 1
      %p57 = por %p55, %p56
      %p58 = scmp.ne.s32.totalorder %s49, %s50
      %p59 = scmp.eq.s32.totalorder %s18, 0
      %p60 = por %p58, %p59
      %p61 = scmp.ne.s32.totalorder %s49, %s50
      %p62 = scmp.eq.s32.totalorder %s19, 1
      %p63 = por %p61, %p62
      %p65 = scmp.ne.s32.totalorder %s50, %s64
      %p66 = scmp.eq.s32.totalorder %s19, 0
      %p67 = por %p65, %p66
      %s69 = sadd.s32 %s68, 1
      %p72 = scmp.eq.s32.totalorder %s13, 1
      %p73 = scmp.ne.s32.totalorder %s68, %s70
      %p74 = scmp.eq.s32.totalorder %s13, 0
      %p75 = por %p73, %p74
      %p76 = scmp.ne.s32.totalorder %s68, %s70
      %p77 = scmp.eq.s32.totalorder %s18, 1
      %p78 = por %p76, %p77
      %p79 = scmp.ne.s32.totalorder %s70, %s71
      %p80 = scmp.eq.s32.totalorder %s18, 0
      %p81 = por %p79, %p80
      %p82 = scmp.ne.s32.totalorder %s70, %s71
      %p83 = scmp.eq.s32.totalorder %s19, 1
      %p84 = por %p82, %p83
      %p86 = scmp.ne.s32.totalorder %s71, %s85
      %p87 = scmp.eq.s32.totalorder %s19, 0
      %p88 = por %p86, %p87
      %s90 = sadd.s32 %s89, 1
      %p93 = scmp.eq.s32.totalorder %s13, 1
      %p94 = scmp.ne.s32.totalorder %s89, %s91
      %p95 = scmp.eq.s32.totalorder %s13, 0
      %p96 = por %p94, %p95
      %p97 = scmp.ne.s32.totalorder %s89, %s91
      %p98 = scmp.eq.s32.totalorder %s18, 1
      %p99 = por %p97, %p98
      %p100 = scmp.ne.s32.totalorder %s91, %s92
      %p101 = scmp.eq.s32.totalorder %s18, 0
      %p102 = por %p100, %p101
      %p103 = scmp.ne.s32.totalorder %s91, %s92
      %p104 = scmp.eq.s32.totalorder %s19, 1
      %p105 = por %p103, %p104
      %p107 = scmp.ne.s32.totalorder %s92, %s106
      %p108 = scmp.eq.s32.totalorder %s19, 0
      %p109 = por %p107, %p108
      %s111 = sadd.s32 %s110, 1
      %p114 = scmp.eq.s32.totalorder %s13, 1
      %p115 = scmp.ne.s32.totalorder %s110, %s112
      %p116 = scmp.eq.s32.totalorder %s13, 0
      %p117 = por %p115, %p116
      %p118 = scmp.ne.s32.totalorder %s110, %s112
      %p119 = scmp.eq.s32.totalorder %s18, 1
      %p120 = por %p118, %p119
      %p121 = scmp.ne.s32.totalorder %s112, %s113
      %p122 = scmp.eq.s32.totalorder %s18, 0
      %p123 = por %p121, %p122
      %p124 = scmp.ne.s32.totalorder %s112, %s113
      %p125 = scmp.eq.s32.totalorder %s19, 1
      %p126 = por %p124, %p125
      %p128 = scmp.ne.s32.totalorder %s113, %s127
      %p129 = scmp.eq.s32.totalorder %s19, 0
      %p130 = por %p128, %p129
      %s131 = ssub.s32 %s13, %s20
      %p132 = scmp.eq.s32.totalorder %s131, 0
      %s134 = sadd.s32 %s133, 1
      %s135 = scalar_select %p132, %s133, %s134
      %p138 = pneg %p132
      %p139 = scmp.eq.s32.totalorder %s13, 1
      %p140 = por %p138, %p139
      %p141 = scmp.ne.s32.totalorder %s133, %s136
      %p142 = scmp.eq.s32.totalorder %s13, 0
      %p143 = por %p141, %p142
      %p144 = scmp.ne.s32.totalorder %s133, %s136
      %p145 = scmp.eq.s32.totalorder %s18, 1
      %p146 = por %p144, %p145
      %p147 = scmp.ne.s32.totalorder %s136, %s137
      %p148 = scmp.eq.s32.totalorder %s18, 0
      %p149 = por %p147, %p148
      %p150 = scmp.ne.s32.totalorder %s136, %s137
      %p151 = scmp.eq.s32.totalorder %s19, 1
      %p152 = por %p150, %p151
      %p154 = scmp.ne.s32.totalorder %s137, %s153
      %p155 = scmp.eq.s32.totalorder %s19, 0
      %p156 = por %p154, %p155
      %p157 = scmp.le.s32.totalorder 1, %s13
      %p158 = scmp.lt.s32.totalorder %s13, 3
      %p159 = pnand %p157, %p158
      %p160 = pneg %p159
      // Predicated region
      $region9: #{tpu_custom_call.1} parent=5 // pred_check
        _
      $region10: #{tpu_custom_call.1} parent=5 // pred_check_branch
        %162 = sbr.rel (%p159) target = $region12
      $region11: #{tpu_custom_call.1} parent=5 // pred_region
        %s163 = ssub.s32 %s13, 1
        // Predicated region
        $region13: #{tpu_custom_call.1} parent=11 // pred_check
          %p164 = pneg %p60
        $region14: #{tpu_custom_call.1} parent=11 // pred_check_branch
          %166 = sbr.rel (%p164) target = $region16
        $region15: #{tpu_custom_call.1} parent=11 // pred_region
          %s168 = ssub.s32 1152, 1152
          %169 = vsyncadd [#allocation3], %s168
          %s170 = sshll.u32 [#allocation2], 4
          %s171 = int_to_ptr.vmem [resolvable:$true] %s170
          %176 = dma.hbm_to_vmem [thread:$0]  %s1, 1152, %s171, [#allocation3], 384, 384, 24
        $region16: #{tpu_custom_call.1} parent=11 // pred_fallthru
          _
        // Predicated region
        $region17: #{tpu_custom_call.1} parent=11 // pred_check
          %p177 = pneg %p81
        $region18: #{tpu_custom_call.1} parent=11 // pred_check_branch
          %179 = sbr.rel (%p177) target = $region20
        $region19: #{tpu_custom_call.1} parent=11 // pred_region
          _
        $region20: #{tpu_custom_call.1} parent=11 // pred_fallthru
          _
        // Predicated region
        $region21: #{tpu_custom_call.1} parent=11 // pred_check
          %p180 = pneg %p102
        $region22: #{tpu_custom_call.1} parent=11 // pred_check_branch
          %182 = sbr.rel (%p180) target = $region24
        $region23: #{tpu_custom_call.1} parent=11 // pred_region
          %s184 = ssub.s32 1536, 1536
          %185 = vsyncadd [#allocation5], %s184
          %s186 = sshll.u32 [#allocation4], 4
          %s187 = int_to_ptr.vmem [resolvable:$true] %s186
          %192 = dma.hbm_to_vmem [thread:$0]  %s3, 1536, %s187, [#allocation5], 256, 256, 16
        $region24: #{tpu_custom_call.1} parent=11 // pred_fallthru
          _
        // Predicated region
        $region25: #{tpu_custom_call.1} parent=11 // pred_check
          %p193 = pneg %p123
        $region26: #{tpu_custom_call.1} parent=11 // pred_check_branch
          %195 = sbr.rel (%p193) target = $region28
        $region27: #{tpu_custom_call.1} parent=11 // pred_region
          _
        $region28: #{tpu_custom_call.1} parent=11 // pred_fallthru
          _
      $region12: #{tpu_custom_call.1} parent=5 // pred_fallthru
        _
      %p196 = scmp.lt.s32.totalorder %s13, 2
      // Predicated region
      $region29: #{tpu_custom_call.1} parent=5 // pred_check
        %p197 = pneg %p196
      $region30: #{tpu_custom_call.1} parent=5 // pred_check_branch
        %199 = sbr.rel (%p197) target = $region32
      $region31: #{tpu_custom_call.1} parent=5 // pred_region
        // Predicated region
        $region33: #{tpu_custom_call.1} parent=31 // pred_check
          %p200 = pneg %p33
        $region34: #{tpu_custom_call.1} parent=31 // pred_check_branch
          %202 = sbr.rel (%p200) target = $region36
        $region35: #{tpu_custom_call.1} parent=31 // pred_region
          %p203 = scmp.lt.s32.totalorder %s13, 1
          %s204 = scalar_select %p203, %s13, 1
          %s205 = smul.addr %s204, 2
          %s206 = scalar_lea.vmem %s0, %s205
        $region36: #{tpu_custom_call.1} parent=31 // pred_fallthru
          _
      $region32: #{tpu_custom_call.1} parent=5 // pred_fallthru
        _
      %p207 = scmp.le.s32.totalorder 1, %s13
      %p208 = scmp.lt.s32.totalorder %s13, 3
      %p209 = pnand %p207, %p208
      %p210 = pneg %p209
      // Predicated region
      $region37: #{tpu_custom_call.1} parent=5 // pred_check
        _
      $region38: #{tpu_custom_call.1} parent=5 // pred_check_branch
        %212 = sbr.rel (%p209) target = $region40
      $region39: #{tpu_custom_call.1} parent=5 // pred_region
        %s213 = ssub.s32 %s13, 1
        // Predicated region
        $region41: #{tpu_custom_call.1} parent=39 // pred_check
          %p214 = pneg %p60
        $region42: #{tpu_custom_call.1} parent=39 // pred_check_branch
          %216 = sbr.rel (%p214) target = $region44
        $region43: #{tpu_custom_call.1} parent=39 // pred_region
          %217 = dma.done [#allocation3], 1152
        $region44: #{tpu_custom_call.1} parent=39 // pred_fallthru
          _
        // Predicated region
        $region45: #{tpu_custom_call.1} parent=39 // pred_check
          %p218 = pneg %p102
        $region46: #{tpu_custom_call.1} parent=39 // pred_check_branch
          %220 = sbr.rel (%p218) target = $region48
        $region47: #{tpu_custom_call.1} parent=39 // pred_region
          %221 = dma.done [#allocation5], 1536
        $region48: #{tpu_custom_call.1} parent=39 // pred_fallthru
          _
        %p222 = scmp.lt.s32.totalorder %s18, 1
        %s223 = scalar_select %p222, %s18, 1
        %s224 = smul.addr %s223, 2
        %s225 = scalar_lea.vmem %s0, %s224
        %p226 = pneg %p39
        %p227 = pneg %p36
        %p228 = pneg %p60
        %p229 = pneg %p57
        %p230 = pneg %p81
        %p231 = pneg %p78
        %p232 = pneg %p102
        %p233 = pneg %p99
        %p234 = pneg %p123
        %p235 = pneg %p120
        %p236 = pneg %p149
        %p237 = pneg %p146
        %p238 = scmp.lt.s32.totalorder %s18, 1
        %s239 = scalar_select %p238, %s18, 1
        %s240 = smul.addr %s239, 2
        %s241 = scalar_lea.vmem %s5, %s240
        %p242 = scmp.lt.s32.totalorder %s18, 1
        %s243 = scalar_select %p242, %s18, 1
        %s244 = smul.addr %s243, 2
        %s245 = scalar_lea.vmem %s0, %s244
        %p246 = scmp.lt.s32.totalorder %s18, 1
        %s247 = scalar_select %p246, %s18, 1
        %s248 = smul.addr %s247, 2
        %s249 = scalar_lea.vmem %s5, %s248
        %v250 = vld [vmem:[%s245] sm:$0x3]
        %v251 = vlaneseq
        %v252 = vshrl.u32 %v251, 7
        %v253 = vadd.s32 %v252, 8
        %v254 = vadd.s32 %v252, 16
        %v255 = vadd.s32 %v252, 24
        %v256 = vadd.s32 %v252, 32
        %v257 = vadd.s32 %v252, 40
        %v258 = vadd.s32 %v252, 48
        %v259 = vlaneseq
        %v260 = vshrl.u32 %v259, 7
        %v261 = vsub.s32 0, %v260
        %v262 = vrot.slane %v250, %v261
        %v263 = vlaneseq
        %v264 = vshrl.u32 %v263, 7
        %v265 = vsub.s32 1, %v264
        %v266 = vrot.slane %v250, %v265
        %vm267 = vcmp.eq.s32.totalorder %v252, %v262
        %vm268 = vcmp.eq.s32.totalorder %v252, %v266
        %vm269 = vcmp.eq.s32.totalorder %v253, %v262
        %vm270 = vcmp.eq.s32.totalorder %v253, %v266
        %vm271 = vcmp.eq.s32.totalorder %v254, %v262
        %vm272 = vcmp.eq.s32.totalorder %v254, %v266
        %vm273 = vcmp.eq.s32.totalorder %v255, %v262
        %vm274 = vcmp.eq.s32.totalorder %v255, %v266
        %vm275 = vcmp.eq.s32.totalorder %v256, %v262
        %vm276 = vcmp.eq.s32.totalorder %v256, %v266
        %vm277 = vcmp.eq.s32.totalorder %v257, %v262
        %vm278 = vcmp.eq.s32.totalorder %v257, %v266
        %vm279 = vcmp.eq.s32.totalorder %v258, %v262
        %vm280 = vcmp.eq.s32.totalorder %v258, %v266
        %v281 = vsel %vm267, 1, 0
        %v282 = vsel %vm268, 1, 0
        %v283 = vsel %vm269, 1, 0
        %v284 = vsel %vm270, 1, 0
        %v285 = vsel %vm271, 1, 0
        %v286 = vsel %vm272, 1, 0
        %v287 = vsel %vm273, 1, 0
        %v288 = vsel %vm274, 1, 0
        %v289 = vsel %vm275, 1, 0
        %v290 = vsel %vm276, 1, 0
        %v291 = vsel %vm277, 1, 0
        %v292 = vsel %vm278, 1, 0
        %v293 = vsel %vm279, 1, 0
        %v294 = vsel %vm280, 1, 0
        %v295 = vcvt.s32.f32 %v281
        %v296 = vcvt.s32.f32 %v282
        %v297 = vcvt.s32.f32 %v283
        %v298 = vcvt.s32.f32 %v284
        %v299 = vcvt.s32.f32 %v285
        %v300 = vcvt.s32.f32 %v286
        %v301 = vcvt.s32.f32 %v287
        %v302 = vcvt.s32.f32 %v288
        %v303 = vcvt.s32.f32 %v289
        %v304 = vcvt.s32.f32 %v290
        %v305 = vcvt.s32.f32 %v291
        %v306 = vcvt.s32.f32 %v292
        %v307 = vcvt.s32.f32 %v293
        %v308 = vcvt.s32.f32 %v294
        %323 = vrot.lane.b32.xlu0 %v295, 127
        %v324 = vpop.permute.xlu0 %323
        %325 = vrot.lane.b32.xlu0 %v296, 127
        %v326 = vpop.permute.xlu0 %325
        %327 = vrot.lane.b32.xlu0 %v297, 127
        %v328 = vpop.permute.xlu0 %327
        %329 = vrot.lane.b32.xlu0 %v298, 127
        %v330 = vpop.permute.xlu0 %329
        %331 = vrot.lane.b32.xlu0 %v299, 127
        %v332 = vpop.permute.xlu0 %331
        %333 = vrot.lane.b32.xlu0 %v300, 127
        %v334 = vpop.permute.xlu0 %333
        %335 = vrot.lane.b32.xlu0 %v301, 127
        %v336 = vpop.permute.xlu0 %335
        %337 = vrot.lane.b32.xlu0 %v302, 127
        %v338 = vpop.permute.xlu0 %337
        %339 = vrot.lane.b32.xlu0 %v303, 127
        %v340 = vpop.permute.xlu0 %339
        %341 = vrot.lane.b32.xlu0 %v304, 127
        %v342 = vpop.permute.xlu0 %341
        %343 = vrot.lane.b32.xlu0 %v305, 127
        %v344 = vpop.permute.xlu0 %343
        %345 = vrot.lane.b32.xlu0 %v306, 127
        %v346 = vpop.permute.xlu0 %345
        %347 = vrot.lane.b32.xlu0 %v307, 127
        %v348 = vpop.permute.xlu0 %347
        %349 = vrot.lane.b32.xlu0 %v308, 127
        %v350 = vpop.permute.xlu0 %349
        %vm351 = vcmask 1039360
        %v352 = vsel %vm351, %v324, %v326
        %v353 = vsel %vm351, %v328, %v330
        %v354 = vsel %vm351, %v332, %v334
        %v355 = vsel %vm351, %v336, %v338
        %v356 = vsel %vm351, %v340, %v342
        %v357 = vsel %vm351, %v344, %v346
        %v358 = vsel %vm351, %v348, %v350
        %373 = vrot.lane.b32.xlu0 %v295, 126
        %v374 = vpop.permute.xlu0 %373
        %375 = vrot.lane.b32.xlu0 %v296, 126
        %v376 = vpop.permute.xlu0 %375
        %377 = vrot.lane.b32.xlu0 %v297, 126
        %v378 = vpop.permute.xlu0 %377
        %379 = vrot.lane.b32.xlu0 %v298, 126
        %v380 = vpop.permute.xlu0 %379
        %381 = vrot.lane.b32.xlu0 %v299, 126
        %v382 = vpop.permute.xlu0 %381
        %383 = vrot.lane.b32.xlu0 %v300, 126
        %v384 = vpop.permute.xlu0 %383
        %385 = vrot.lane.b32.xlu0 %v301, 126
        %v386 = vpop.permute.xlu0 %385
        %387 = vrot.lane.b32.xlu0 %v302, 126
        %v388 = vpop.permute.xlu0 %387
        %389 = vrot.lane.b32.xlu0 %v303, 126
        %v390 = vpop.permute.xlu0 %389
        %391 = vrot.lane.b32.xlu0 %v304, 126
        %v392 = vpop.permute.xlu0 %391
        %393 = vrot.lane.b32.xlu0 %v305, 126
        %v394 = vpop.permute.xlu0 %393
        %395 = vrot.lane.b32.xlu0 %v306, 126
        %v396 = vpop.permute.xlu0 %395
        %397 = vrot.lane.b32.xlu0 %v307, 126
        %v398 = vpop.permute.xlu0 %397
        %399 = vrot.lane.b32.xlu0 %v308, 126
        %v400 = vpop.permute.xlu0 %399
        %vm401 = vcmask 1031168
        %v402 = vsel %vm401, %v374, %v376
        %v403 = vsel %vm401, %v378, %v380
        %v404 = vsel %vm401, %v382, %v384
        %v405 = vsel %vm401, %v386, %v388
        %v406 = vsel %vm401, %v390, %v392
        %v407 = vsel %vm401, %v394, %v396
        %v408 = vsel %vm401, %v398, %v400
        %423 = vrot.lane.b32.xlu0 %v295, 125
        %v424 = vpop.permute.xlu0 %423
        %425 = vrot.lane.b32.xlu0 %v296, 125
        %v426 = vpop.permute.xlu0 %425
        %427 = vrot.lane.b32.xlu0 %v297, 125
        %v428 = vpop.permute.xlu0 %427
        %429 = vrot.lane.b32.xlu0 %v298, 125
        %v430 = vpop.permute.xlu0 %429
        %431 = vrot.lane.b32.xlu0 %v299, 125
        %v432 = vpop.permute.xlu0 %431
        %433 = vrot.lane.b32.xlu0 %v300, 125
        %v434 = vpop.permute.xlu0 %433
        %435 = vrot.lane.b32.xlu0 %v301, 125
        %v436 = vpop.permute.xlu0 %435
        %437 = vrot.lane.b32.xlu0 %v302, 125
        %v438 = vpop.permute.xlu0 %437
        %439 = vrot.lane.b32.xlu0 %v303, 125
        %v440 = vpop.permute.xlu0 %439
        %441 = vrot.lane.b32.xlu0 %v304, 125
        %v442 = vpop.permute.xlu0 %441
        %443 = vrot.lane.b32.xlu0 %v305, 125
        %v444 = vpop.permute.xlu0 %443
        %445 = vrot.lane.b32.xlu0 %v306, 125
        %v446 = vpop.permute.xlu0 %445
        %447 = vrot.lane.b32.xlu0 %v307, 125
        %v448 = vpop.permute.xlu0 %447
        %449 = vrot.lane.b32.xlu0 %v308, 125
        %v450 = vpop.permute.xlu0 %449
        %vm451 = vcmask 1022976
        %v452 = vsel %vm451, %v424, %v426
        %v453 = vsel %vm451, %v428, %v430
        %v454 = vsel %vm451, %v432, %v434
        %v455 = vsel %vm451, %v436, %v438
        %v456 = vsel %vm451, %v440, %v442
        %v457 = vsel %vm451, %v444, %v446
        %v458 = vsel %vm451, %v448, %v450
        %473 = vrot.lane.b32.xlu0 %v295, 124
        %v474 = vpop.permute.xlu0 %473
        %475 = vrot.lane.b32.xlu0 %v296, 124
        %v476 = vpop.permute.xlu0 %475
        %477 = vrot.lane.b32.xlu0 %v297, 124
        %v478 = vpop.permute.xlu0 %477
        %479 = vrot.lane.b32.xlu0 %v298, 124
        %v480 = vpop.permute.xlu0 %479
        %481 = vrot.lane.b32.xlu0 %v299, 124
        %v482 = vpop.permute.xlu0 %481
        %483 = vrot.lane.b32.xlu0 %v300, 124
        %v484 = vpop.permute.xlu0 %483
        %485 = vrot.lane.b32.xlu0 %v301, 124
        %v486 = vpop.permute.xlu0 %485
        %487 = vrot.lane.b32.xlu0 %v302, 124
        %v488 = vpop.permute.xlu0 %487
        %489 = vrot.lane.b32.xlu0 %v303, 124
        %v490 = vpop.permute.xlu0 %489
        %491 = vrot.lane.b32.xlu0 %v304, 124
        %v492 = vpop.permute.xlu0 %491
        %493 = vrot.lane.b32.xlu0 %v305, 124
        %v494 = vpop.permute.xlu0 %493
        %495 = vrot.lane.b32.xlu0 %v306, 124
        %v496 = vpop.permute.xlu0 %495
        %497 = vrot.lane.b32.xlu0 %v307, 124
        %v498 = vpop.permute.xlu0 %497
        %499 = vrot.lane.b32.xlu0 %v308, 124
        %v500 = vpop.permute.xlu0 %499
        %vm501 = vcmask 1014784
        %v502 = vsel %vm501, %v474, %v476
        %v503 = vsel %vm501, %v478, %v480
        %v504 = vsel %vm501, %v482, %v484
        %v505 = vsel %vm501, %v486, %v488
        %v506 = vsel %vm501, %v490, %v492
        %v507 = vsel %vm501, %v494, %v496
        %v508 = vsel %vm501, %v498, %v500
        %v523 = vld [vmem:[#allocation2] sm:$0xff]
        %v524 = vld [vmem:[#allocation2 + $0x8] sm:$0xff]
        %v525 = vld [vmem:[#allocation2 + $0x10] sm:$0xff]
        %v526 = vld [vmem:[#allocation2 + $0x18] sm:$0xff]
        %v527 = vld [vmem:[#allocation2 + $0x20] sm:$0xff]
        %v528 = vld [vmem:[#allocation2 + $0x28] sm:$0xff]
        %v529 = vld [vmem:[#allocation2 + $0x30] sm:$0xff]
        %v530 = vld [vmem:[#allocation2 + $0x38] sm:$0xff]
        %v531 = vld [vmem:[#allocation2 + $0x40] sm:$0xff]
        %v532 = vld [vmem:[%s2] sm:$0xff]
        %v533 = vld [vmem:[%s2 + $0x8] sm:$0xff]
        %v534 = vld [vmem:[%s2 + $0x10] sm:$0xff]
        %536 = vset.pattern.permute.xlu0 0
        %537 = vperm.xlu0 %536, %v532
        %v538 = vpop.permute.xlu0 %537
        %541 = vset.pattern.permute.xlu0 0
        %542 = vperm.xlu0 %541, %v533
        %v543 = vpop.permute.xlu0 %542
        %546 = vset.pattern.permute.xlu0 0
        %547 = vperm.xlu0 %546, %v534
        %v548 = vpop.permute.xlu0 %547
        %vm550 = vcmask 195584
        %v552 = vsel %vm550, %v525, 0
        %v555 = vsel %vm550, %v528, 0
        %v558 = vsel %vm550, %v531, 0
        %560 = vmatprep.subr.mxu0 %v380
        %561 = vmatpush1.msra.mxu0 %v403
        %562 = vmatprep.subr.mxu0 %v376
        %563 = vmatpush1.msra.mxu0 %v402
        %564 = vmatprep.subr.mxu0 %v350
        %565 = vmatpush1.msra.mxu0 %v358
        %566 = vmatprep.subr.mxu0 %v346
        %567 = vmatpush1.msra.mxu0 %v357
        %568 = vmatprep.subr.mxu0 %v342
        %569 = vmatpush1.msra.mxu0 %v356
        %570 = vmatprep.subr.mxu0 %v338
        %571 = vmatpush1.msra.mxu0 %v355
        %572 = vmatprep.subr.mxu0 %v334
        %573 = vmatpush1.msra.mxu0 %v354
        %574 = vmatprep.subr.mxu0 %v330
        %575 = vmatpush1.msra.mxu0 %v353
        %576 = vmatprep.subr.mxu0 %v326
        %577 = vmatpush1.msra.mxu0 %v352
        %578 = vmatprep.subr.mxu0 %v308
        %579 = vmatpush1.msra.mxu0 %v307
        %580 = vmatprep.subr.mxu0 %v306
        %581 = vmatpush1.msra.mxu0 %v305
        %582 = vmatprep.subr.mxu0 %v304
        %583 = vmatpush1.msra.mxu0 %v303
        %584 = vmatprep.subr.mxu0 %v302
        %585 = vmatpush1.msra.mxu0 %v301
        %586 = vmatprep.subr.mxu0 %v300
        %587 = vmatpush1.msra.mxu0 %v299
        %588 = vmatprep.subr.mxu0 %v298
        %589 = vmatpush1.msra.mxu0 %v297
        %590 = vmatprep.subr.mxu0 %v296
        %591 = vmatpush1.msra.mxu0 %v295
        %592 = vmatprep.subr.mxu0 %v488
        %593 = vmatpush2.msra.mxu0 %v505
        %594 = vmatprep.subr.mxu0 %v484
        %595 = vmatpush2.msra.mxu0 %v504
        %596 = vmatprep.subr.mxu0 %v480
        %597 = vmatpush2.msra.mxu0 %v503
        %598 = vmatprep.subr.mxu0 %v476
        %599 = vmatpush2.msra.mxu0 %v502
        %600 = vmatprep.subr.mxu0 %v450
        %601 = vmatpush2.msra.mxu0 %v458
        %602 = vmatprep.subr.mxu0 %v446
        %603 = vmatpush2.msra.mxu0 %v457
        %604 = vmatprep.subr.mxu0 %v442
        %605 = vmatpush2.msra.mxu0 %v456
        %606 = vmatprep.subr.mxu0 %v438
        %607 = vmatpush2.msra.mxu0 %v455
        %608 = vmatprep.subr.mxu0 %v434
        %609 = vmatpush2.msra.mxu0 %v454
        %610 = vmatprep.subr.mxu0 %v430
        %611 = vmatpush2.msra.mxu0 %v453
        %612 = vmatprep.subr.mxu0 %v426
        %613 = vmatpush2.msra.mxu0 %v452
        %614 = vmatprep.subr.mxu0 %v400
        %615 = vmatpush2.msra.mxu0 %v408
        %616 = vmatprep.subr.mxu0 %v396
        %617 = vmatpush2.msra.mxu0 %v407
        %618 = vmatprep.subr.mxu0 %v392
        %619 = vmatpush2.msra.mxu0 %v406
        %620 = vmatprep.subr.mxu0 %v388
        %621 = vmatpush2.msra.mxu0 %v405
        %622 = vmatprep.subr.mxu0 %v384
        %623 = vmatpush2.msra.mxu0 %v404
        %624 = vmatprep.mubr.f32.mxu0 %v524
        %625 = vmatmul.mubr.f32.gmra.mxu0 %v523
        %v626 = vpop.f32.mrf.mxu0
        %v627 = vadd.f32 %v538, %v626
        %v628 = vpop.f32.mrf.mxu0
        %v629 = vadd.f32 %v538, %v628
        %630 = vmatprep.mubr.f32.mxu0 %v527
        %631 = vmatmul.mubr.f32.gmra.mxu0 %v526
        %v632 = vpop.f32.mrf.mxu0
        %v633 = vadd.f32 %v543, %v632
        %v634 = vpop.f32.mrf.mxu0
        %v635 = vadd.f32 %v543, %v634
        %636 = vmatprep.mubr.f32.mxu0 %v530
        %637 = vmatmul.mubr.f32.gmra.mxu0 %v529
        %v638 = vpop.f32.mrf.mxu0
        %v639 = vadd.f32 %v548, %v638
        %v640 = vpop.f32.mrf.mxu0
        %v641 = vadd.f32 %v548, %v640
        %642 = vdwg.mxu0
        %643 = vmatprep.subr.mxu0 0.0
        %644 = vmatpush1.msra.mxu0 0.0
        %645 = vmatprep.subr.mxu0 0.0
        %646 = vmatpush1.msra.mxu0 0.0
        %647 = vmatprep.subr.mxu0 0.0
        %648 = vmatpush1.msra.mxu0 0.0
        %649 = vmatprep.subr.mxu0 0.0
        %650 = vmatpush1.msra.mxu0 0.0
        %651 = vmatprep.subr.mxu0 0.0
        %652 = vmatpush1.msra.mxu0 0.0
        %653 = vmatprep.subr.mxu0 0.0
        %654 = vmatpush1.msra.mxu0 0.0
        %655 = vmatprep.subr.mxu0 0.0
        %656 = vmatpush1.msra.mxu0 0.0
        %657 = vmatprep.subr.mxu0 0.0
        %658 = vmatpush1.msra.mxu0 0.0
        %659 = vmatprep.subr.mxu0 0.0
        %660 = vmatpush1.msra.mxu0 0.0
        %661 = vmatprep.subr.mxu0 0.0
        %662 = vmatpush1.msra.mxu0 0.0
        %663 = vmatprep.subr.mxu0 0.0
        %664 = vmatpush1.msra.mxu0 0.0
        %665 = vmatprep.subr.mxu0 0.0
        %666 = vmatpush1.msra.mxu0 0.0
        %667 = vmatprep.subr.mxu0 0.0
        %668 = vmatpush1.msra.mxu0 0.0
        %669 = vmatprep.subr.mxu0 %v500
        %670 = vmatpush1.msra.mxu0 %v508
        %671 = vmatprep.subr.mxu0 %v496
        %672 = vmatpush1.msra.mxu0 %v507
        %673 = vmatprep.subr.mxu0 %v492
        %674 = vmatpush1.msra.mxu0 %v506
        %675 = vmatprep.subr.mxu0 0.0
        %676 = vmatpush2.msra.mxu0 0.0
        %677 = vmatprep.subr.mxu0 0.0
        %678 = vmatpush2.msra.mxu0 0.0
        %679 = vmatprep.subr.mxu0 0.0
        %680 = vmatpush2.msra.mxu0 0.0
        %681 = vmatprep.subr.mxu0 0.0
        %682 = vmatpush2.msra.mxu0 0.0
        %683 = vmatprep.subr.mxu0 0.0
        %684 = vmatpush2.msra.mxu0 0.0
        %685 = vmatprep.subr.mxu0 0.0
        %686 = vmatpush2.msra.mxu0 0.0
        %687 = vmatprep.subr.mxu0 0.0
        %688 = vmatpush2.msra.mxu0 0.0
        %689 = vmatprep.subr.mxu0 0.0
        %690 = vmatpush2.msra.mxu0 0.0
        %691 = vmatprep.subr.mxu0 0.0
        %692 = vmatpush2.msra.mxu0 0.0
        %693 = vmatprep.subr.mxu0 0.0
        %694 = vmatpush2.msra.mxu0 0.0
        %695 = vmatprep.subr.mxu0 0.0
        %696 = vmatpush2.msra.mxu0 0.0
        %697 = vmatprep.subr.mxu0 0.0
        %698 = vmatpush2.msra.mxu0 0.0
        %699 = vmatprep.subr.mxu0 0.0
        %700 = vmatpush2.msra.mxu0 0.0
        %701 = vmatprep.subr.mxu0 0.0
        %702 = vmatpush2.msra.mxu0 0.0
        %703 = vmatprep.subr.mxu0 0.0
        %704 = vmatpush2.msra.mxu0 0.0
        %705 = vmatprep.subr.mxu0 0.0
        %706 = vmatpush2.msra.mxu0 0.0
        %707 = vmatprep.mubr.f32.mxu0 0.0
        %708 = vmatmul.mubr.f32.gmra.mxu0 %v552
        %v709 = vpop.f32.mrf.mxu0
        %v710 = vadd.f32 %v627, %v709
        %v711 = vpop.f32.mrf.mxu0
        %v712 = vadd.f32 %v629, %v711
        %713 = vmatprep.mubr.f32.mxu0 0.0
        %714 = vmatmul.mubr.f32.gmra.mxu0 %v555
        %v715 = vpop.f32.mrf.mxu0
        %v716 = vadd.f32 %v633, %v715
        %v717 = vpop.f32.mrf.mxu0
        %v718 = vadd.f32 %v635, %v717
        %719 = vmatprep.mubr.f32.mxu0 0.0
        %720 = vmatmul.mubr.f32.gmra.mxu0 %v558
        %v721 = vpop.f32.mrf.mxu0
        %v722 = vadd.f32 %v639, %v721
        %v723 = vpop.f32.mrf.mxu0
        %v724 = vadd.f32 %v641, %v723
        %725 = vdwg.mxu0
        %vm726 = vcmp.ge.f32.partialorder %v710, 0.0
        %vm727 = vcmp.ge.f32.partialorder %v712, 0.0
        %vm728 = vcmp.ge.f32.partialorder %v716, 0.0
        %vm729 = vcmp.ge.f32.partialorder %v718, 0.0
        %vm730 = vcmp.ge.f32.partialorder %v722, 0.0
        %vm731 = vcmp.ge.f32.partialorder %v724, 0.0
        %v732 = vmul.f32 %v710, 0.2
        %v733 = vmul.f32 %v712, 0.2
        %v734 = vmul.f32 %v716, 0.2
        %v735 = vmul.f32 %v718, 0.2
        %v736 = vmul.f32 %v722, 0.2
        %v737 = vmul.f32 %v724, 0.2
        %v738 = vsel %vm726, %v710, %v732
        %v739 = vsel %vm727, %v712, %v733
        %v740 = vsel %vm728, %v716, %v734
        %v741 = vsel %vm729, %v718, %v735
        %v742 = vsel %vm730, %v722, %v736
        %v743 = vsel %vm731, %v724, %v737
        %744 = vset.pattern.permute.xlu0 1
        %745 = vperm.xlu0 %744, %v532
        %v746 = vpop.permute.xlu0 %745
        %748 = vset.pattern.permute.xlu0 1
        %749 = vperm.xlu0 %748, %v533
        %v750 = vpop.permute.xlu0 %749
        %752 = vset.pattern.permute.xlu0 1
        %753 = vperm.xlu0 %752, %v534
        %v754 = vpop.permute.xlu0 %753
        %v756 = vmul.f32 %v738, %v746
        %v757 = vmul.f32 %v739, %v746
        %v758 = vmul.f32 %v740, %v750
        %v759 = vmul.f32 %v741, %v750
        %v760 = vmul.f32 %v742, %v754
        %v761 = vmul.f32 %v743, %v754
        %762 = vset.pattern.permute.xlu0 2
        %763 = vperm.xlu0 %762, %v532
        %v764 = vpop.permute.xlu0 %763
        %766 = vset.pattern.permute.xlu0 2
        %767 = vperm.xlu0 %766, %v533
        %v768 = vpop.permute.xlu0 %767
        %770 = vset.pattern.permute.xlu0 2
        %771 = vperm.xlu0 %770, %v534
        %v772 = vpop.permute.xlu0 %771
        %v774 = vadd.f32 %v756, %v764
        %v775 = vadd.f32 %v757, %v764
        %v776 = vadd.f32 %v758, %v768
        %v777 = vadd.f32 %v759, %v768
        %v778 = vadd.f32 %v760, %v772
        %v779 = vadd.f32 %v761, %v772
        %786 = vrot.lane.b32.xlu0 %v774, 127
        %v787 = vpop.permute.xlu0 %786
        %788 = vrot.lane.b32.xlu0 %v775, 127
        %v789 = vpop.permute.xlu0 %788
        %790 = vrot.lane.b32.xlu0 %v776, 127
        %v791 = vpop.permute.xlu0 %790
        %792 = vrot.lane.b32.xlu0 %v777, 127
        %v793 = vpop.permute.xlu0 %792
        %794 = vrot.lane.b32.xlu0 %v778, 127
        %v795 = vpop.permute.xlu0 %794
        %796 = vrot.lane.b32.xlu0 %v779, 127
        %v797 = vpop.permute.xlu0 %796
        %v798 = vsel %vm351, %v787, %v789
        %v799 = vsel %vm351, %v791, %v793
        %v800 = vsel %vm351, %v795, %v797
        %v807 = vmax.f32 %v774, %v798
        %v808 = vmax.f32 %v775, %v789
        %v809 = vmax.f32 %v776, %v799
        %v810 = vmax.f32 %v777, %v793
        %v811 = vmax.f32 %v778, %v800
        %v812 = vmax.f32 %v779, %v797
        %v813 = vld [vmem:[#allocation4] sm:$0xff]
        %v814 = vld [vmem:[#allocation4 + $0x8] sm:$0xff]
        %v815 = vld [vmem:[#allocation4 + $0x10] sm:$0xff]
        %v816 = vld [vmem:[#allocation4 + $0x18] sm:$0xff]
        %v817 = vld [vmem:[#allocation4 + $0x20] sm:$0xff]
        %v818 = vld [vmem:[#allocation4 + $0x28] sm:$0xff]
        %v819 = vld [vmem:[#allocation4 + $0x30] sm:$0xff]
        %v820 = vld [vmem:[#allocation4 + $0x38] sm:$0xff]
        %v821 = vld [vmem:[#allocation4 + $0x40] sm:$0xff]
        %v822 = vld [vmem:[#allocation4 + $0x48] sm:$0xff]
        %v823 = vld [vmem:[#allocation4 + $0x50] sm:$0xff]
        %v824 = vld [vmem:[#allocation4 + $0x58] sm:$0xff]
        %v825 = vmul.f32 %v813, %v807
        %v826 = vmul.f32 %v814, %v808
        %v827 = vmul.f32 %v815, %v809
        %v828 = vmul.f32 %v816, %v810
        %v829 = vmul.f32 %v817, %v811
        %v830 = vmul.f32 %v818, %v812
        %v831 = vmul.f32 %v819, %v807
        %v832 = vmul.f32 %v820, %v808
        %v833 = vmul.f32 %v821, %v809
        %v834 = vmul.f32 %v822, %v810
        %v835 = vmul.f32 %v823, %v811
        %v836 = vmul.f32 %v824, %v812
        %vm837 = vcmask 154624
        %v838 = vsel %vm837, %v826, 0.0
        %v839 = vadd.f32 %v825, %v838
        %840 = vadd.xlane.f32.xlu0 %v839
        %v841 = vpop.xlane.xlu0 %840
        %v842 = vsel %vm837, %v828, 0.0
        %v843 = vadd.f32 %v827, %v842
        %844 = vadd.xlane.f32.xlu0 %v843
        %v845 = vpop.xlane.xlu0 %844
        %v846 = vsel %vm837, %v830, 0.0
        %v847 = vadd.f32 %v829, %v846
        %848 = vadd.xlane.f32.xlu0 %v847
        %v849 = vpop.xlane.xlu0 %848
        %v850 = vsel %vm837, %v832, 0.0
        %v851 = vadd.f32 %v831, %v850
        %852 = vadd.xlane.f32.xlu0 %v851
        %v853 = vpop.xlane.xlu0 %852
        %v854 = vsel %vm837, %v834, 0.0
        %v855 = vadd.f32 %v833, %v854
        %856 = vadd.xlane.f32.xlu0 %v855
        %v857 = vpop.xlane.xlu0 %856
        %v858 = vsel %vm837, %v836, 0.0
        %v859 = vadd.f32 %v835, %v858
        %860 = vadd.xlane.f32.xlu0 %v859
        %v861 = vpop.xlane.xlu0 %860
        %v868 = vlaneseq
        %v869 = vand.u32 %v868, 127
        %v870 = vlaneseq
        %v871 = vshrl.u32 %v870, 7
        %v872 = vsub.s32 %v869, %v871
        %v873 = vrot.slane %v841, %v872
        %v874 = vadd.s32 %v869, 4294967288
        %v875 = vlaneseq
        %v876 = vshrl.u32 %v875, 7
        %v877 = vsub.s32 %v874, %v876
        %v878 = vrot.slane %v845, %v877
        %vm879 = vcmask 130112
        %v880 = vsel %vm879, %v878, %v873
        %v881 = vadd.s32 %v869, 4294967280
        %v882 = vlaneseq
        %v883 = vshrl.u32 %v882, 7
        %v884 = vsub.s32 %v881, %v883
        %v885 = vrot.slane %v849, %v884
        %vm886 = vcmask 195712
        %v887 = vsel %vm886, %v885, %v880
        %v888 = vlaneseq
        %v889 = vshrl.u32 %v888, 7
        %v890 = vsub.s32 %v869, %v889
        %v891 = vrot.slane %v853, %v890
        %v892 = vlaneseq
        %v893 = vshrl.u32 %v892, 7
        %v894 = vsub.s32 %v874, %v893
        %v895 = vrot.slane %v857, %v894
        %v896 = vsel %vm879, %v895, %v891
        %v897 = vlaneseq
        %v898 = vshrl.u32 %v897, 7
        %v899 = vsub.s32 %v881, %v898
        %v900 = vrot.slane %v861, %v899
        %v901 = vsel %vm886, %v900, %v896
        %vm902 = vcmask 1041409
        %v903 = vsel %vm902, %v901, %v887
        %vm905 = vcmask 189440
        %v906 = vsel %vm905, %v903, 0.0
        %907 = vadd.xlane.f32.xlu0 %v906
        %v908 = vpop.xlane.xlu0 %907
        %v909 = vld [vmem:[%s4] sm:$0x3]
        %v910 = vadd.f32 %v908, %v909
        %vm911 = vcmask 1024
        %912 = vst.msk [vmem:[%s249] sm:$0x3] %vm911, %v910
        %p913 = scmp.lt.s32.totalorder %s18, 1
        %s914 = scalar_select %p913, %s18, 1
        %s915 = smul.addr %s914, 2
        %s916 = scalar_lea.vmem %s5, %s915
        // Predicated region
        $region49: #{tpu_custom_call.1} parent=39 // pred_check
          %p917 = pneg %p146
        $region50: #{tpu_custom_call.1} parent=39 // pred_check_branch
          %919 = sbr.rel (%p917) target = $region52
        $region51: #{tpu_custom_call.1} parent=39 // pred_region
          _
        $region52: #{tpu_custom_call.1} parent=39 // pred_fallthru
          _
      $region40: #{tpu_custom_call.1} parent=5 // pred_fallthru
        _
      %p920 = scmp.le.s32.totalorder 2, %s13
      // Predicated region
      $region53: #{tpu_custom_call.1} parent=5 // pred_check
        %p921 = pneg %p920
      $region54: #{tpu_custom_call.1} parent=5 // pred_check_branch
        %923 = sbr.rel (%p921) target = $region56
      $region55: #{tpu_custom_call.1} parent=5 // pred_region
        %s924 = ssub.s32 %s13, 2
        // Predicated region
        $region57: #{tpu_custom_call.1} parent=55 // pred_check
          %p925 = pneg %p152
        $region58: #{tpu_custom_call.1} parent=55 // pred_check_branch
          %927 = sbr.rel (%p925) target = $region60
        $region59: #{tpu_custom_call.1} parent=55 // pred_region
          %p928 = scmp.lt.s32.totalorder %s19, 1
          %s929 = scalar_select %p928, %s19, 1
          %s930 = smul.addr %s929, 2
          %s931 = scalar_lea.vmem %s5, %s930
        $region60: #{tpu_custom_call.1} parent=55 // pred_fallthru
          _
      $region56: #{tpu_custom_call.1} parent=5 // pred_fallthru
        _
    $region6: #{tpu_custom_call.1} parent=1 // loop_footer
      %s17 = sadd.s32 1, %s13
    $region7: #{tpu_custom_call.1} parent=1 // loop_footer_branch
      %12 = sbr.rel target = $region3
    $region8: #{tpu_custom_call.1} parent=1 // loop_exit
      _
    %932 = vsyncpa [#allocation3], 1
    %s933 = scalar_lea.sflag [#allocation3], 1
    %934 = vsyncpa %s933, 1
    %935 = vsyncpa [#allocation5], 1

</llo_original>
